<compile_context>
chip_gen: v5e
topology: v5e:2x2
jax: 0.10.0
libtpu: 0.0.40
codegen_flags: <defaults>
</compile_context>

<pallas_src>
import functools

import jax
import jax.numpy as jnp
import numpy as np
from jax.experimental import pallas as pl
from jax.experimental.pallas import tpu as pltpu


def _gru_fused_kernel(x2d_ref, wih_ref, whh_ref, bx_ref, bhn_ref, wfc_ref, bfc_ref,
                      out_ref, gx_ref, hs_ref, *, T, B, H):
    # ---- 1) Input projection for all timesteps: one big MXU matmul. ------------
    # gx[t*B + b, :] = x[t, b] @ [Wir|Wiz|Win] + [bir+bhr | biz+bhz | bin]
    gx_ref[...] = (
        jnp.dot(x2d_ref[...], wih_ref[...], preferred_element_type=jnp.float32)
        + bx_ref[...])

    # Loop-invariant loads hoisted out of the recurrence.
    whh = whh_ref[...]            # (H, 3H)  [Whr | Whz | Whn]
    bhn = bhn_ref[...]            # (1, H)   b_hn (must stay inside the r*(.) term)

    def step(t, h):
        row = t * B
        if not isinstance(row, int):          # dynamic path only (large T)
            row = pl.multiple_of(row, B)
        gx_t = gx_ref[pl.ds(row, B), :]                                   # (B, 3H)
        gh = jnp.dot(h, whh, preferred_element_type=jnp.float32)          # (B, 3H)
        r = jax.nn.sigmoid(gx_t[:, :H] + gh[:, :H])
        z = jax.nn.sigmoid(gx_t[:, H:2 * H] + gh[:, H:2 * H])
        n = jnp.tanh(gx_t[:, 2 * H:] + r * (gh[:, 2 * H:] + bhn))
        h_new = (1.0 - z) * n + z * h
        hs_ref[pl.ds(row, B), :] = h_new
        return h_new

    h0 = jnp.zeros((B, H), jnp.float32)
    if T <= 32:
        # Fully unrolled: all slices static, best LLO scheduling for small T.
        h = h0
        for t in range(T):
            h = step(t, h)
    else:
        jax.lax.fori_loop(0, T, step, h0)

    # ---- 2) Output projection, batched over all timesteps. ---------------------
    out_ref[...] = (
        jnp.dot(hs_ref[...], wfc_ref[...], preferred_element_type=jnp.float32)
        + bfc_ref[...]).astype(out_ref.dtype)


def gru_model_forward(x, params):
    """x: (B, T, input_size) float32 -> (B, T, output_size) float32."""
    wih, whh, bih, bhh, wfc, bfc = params
    B, T, I = x.shape
    H = whh.shape[-1]
    O = wfc.shape[-1]

    # Concatenate per-gate weights along the lane dim so the kernel issues one
    # fused matmul per projection (PyTorch gate order r, z, n).
    wih_cat = jnp.concatenate([wih[0], wih[1], wih[2]], axis=-1)               # (I, 3H)
    whh_cat = jnp.concatenate([whh[0], whh[1], whh[2]], axis=-1)               # (H, 3H)
    # r/z biases (bih+bhh) fold into the input projection; bhh_n must stay
    # inside the r*(...) term of the n gate.
    bx = jnp.concatenate([bih[0] + bhh[0], bih[1] + bhh[1], bih[2]], axis=-1)  # (1, 3H)
    bhn = bhh[2]                                                               # (1, H)

    # Time-major and flattened so the whole input projection is a single matmul.
    x2d = jnp.transpose(x, (1, 0, 2)).reshape(T * B, I)

    kernel = functools.partial(_gru_fused_kernel, T=T, B=B, H=H)

    out2d = pl.pallas_call(
        kernel,
        out_shape=jax.ShapeDtypeStruct((T * B, O), jnp.float32),
        grid_spec=pltpu.PrefetchScalarGridSpec(
            num_scalar_prefetch=0,
            grid=(1,),                                        # recurrence lives in-kernel
            in_specs=[
                pl.BlockSpec((T * B, I), lambda i: (0, 0)),   # x, time-major flat
                pl.BlockSpec((I, 3 * H), lambda i: (0, 0)),   # fused Wih
                pl.BlockSpec((H, 3 * H), lambda i: (0, 0)),   # fused Whh
                pl.BlockSpec((1, 3 * H), lambda i: (0, 0)),   # folded input biases
                pl.BlockSpec((1, H), lambda i: (0, 0)),       # bhh_n
                pl.BlockSpec((H, O), lambda i: (0, 0)),       # fc.weight^T
                pl.BlockSpec((1, O), lambda i: (0, 0)),       # fc.bias
            ],
            out_specs=pl.BlockSpec((T * B, O), lambda i: (0, 0)),
            scratch_shapes=[
                pltpu.VMEM((T * B, 3 * H), jnp.float32),      # gates_x for all steps
                pltpu.VMEM((T * B, H), jnp.float32),          # hidden states, all steps
            ],
        ),
        compiler_params=pltpu.CompilerParams(
            dimension_semantics=("arbitrary",)),              # sequential recurrence
    )(x2d, wih_cat, whh_cat, bx, bhn, wfc, bfc)

    # (T*B, O) -> (B, T, O)
    return jnp.transpose(out2d.reshape(T, B, O), (1, 0, 2))


def init_params(key, input_size, hidden_size, output_size):
    """Deterministic init matching PyTorch's shapes (gate order r, z, n)."""
    ks = jax.random.split(key, 6)
    bound = 1.0 / np.sqrt(hidden_size)
    u = lambda k, shape: jax.random.uniform(k, shape, jnp.float32, -bound, bound)
    # Stored pre-transposed: wih[k] = W_i{r,z,n}^T  (input_size, hidden)
    wih = u(ks[0], (3, input_size, hidden_size))
    whh = u(ks[1], (3, hidden_size, hidden_size))
    bih = u(ks[2], (3, 1, hidden_size))
    bhh = u(ks[3], (3, 1, hidden_size))
    wfc = u(ks[4], (hidden_size, output_size))    # fc.weight^T
    bfc = u(ks[5], (1, output_size))
    return wih, whh, bih, bhh, wfc, bfc


def reference_forward(x, params):
    """Pure-JAX reference implementing torch GRU + Linear semantics."""
    wih, whh, bih, bhh, wfc, bfc = params
    B = x.shape[0]
    H = whh.shape[-1]

    def step(h, x_t):
        r = jax.nn.sigmoid(x_t @ wih[0] + bih[0] + h @ whh[0] + bhh[0])
        z = jax.nn.sigmoid(x_t @ wih[1] + bih[1] + h @ whh[1] + bhh[1])
        n = jnp.tanh(x_t @ wih[2] + bih[2] + r * (h @ whh[2] + bhh[2]))
        h_new = (1.0 - z) * n + z * h
        return h_new, h_new

    h0 = jnp.zeros((B, H), jnp.float32)
    _, hs = jax.lax.scan(step, h0, jnp.transpose(x, (1, 0, 2)))  # (T, B, H)
    out = hs @ wfc + bfc
    return jnp.transpose(out, (1, 0, 2))


if __name__ == "__main__":
    input_size, hidden_size, output_size = 16, 32, 8
    B, T = 2, 8

    key = jax.random.PRNGKey(0)
    kx, kp = jax.random.split(key)
    x = jax.random.normal(kx, (B, T, input_size), jnp.float32)
    params = init_params(kp, input_size, hidden_size, output_size)

    out = gru_model_forward(x, params)
    out = jax.block_until_ready(out)

    ref = jax.block_until_ready(reference_forward(x, params))
    np.testing.assert_allclose(np.asarray(out), np.asarray(ref), rtol=2e-4, atol=2e-5)

    print("KERNEL_OK")
</pallas_src>

<mosaic_0001>
module attributes {stable_mosaic.version = 11 : i64} {
  func.func @_gru_fused_kernel(%arg0: i32, %arg1: memref<16x16xf32, #tpu.memory_space<vmem>>, %arg2: memref<16x96xf32, #tpu.memory_space<vmem>>, %arg3: memref<32x96xf32, #tpu.memory_space<vmem>>, %arg4: memref<1x96xf32, #tpu.memory_space<vmem>>, %arg5: memref<1x32xf32, #tpu.memory_space<vmem>>, %arg6: memref<32x8xf32, #tpu.memory_space<vmem>>, %arg7: memref<1x8xf32, #tpu.memory_space<vmem>>, %arg8: memref<16x8xf32, #tpu.memory_space<vmem>>, %arg9: memref<16x96xf32, #tpu.memory_space<vmem>>, %arg10: memref<16x32xf32, #tpu.memory_space<vmem>>) attributes {dimension_semantics = [#tpu.dimension_semantics<arbitrary>], iteration_bounds = array<i64: 1>, scalar_prefetch = 0 : i64, scratch_operands = 2 : i64, tpu.core_type = #tpu.core_type<tc>, window_params = [{pipeline_mode = #tpu.pipeline_mode<synchronous>, transform_indices = @transform_0, window_bounds = array<i64: 16, 16>}, {pipeline_mode = #tpu.pipeline_mode<synchronous>, transform_indices = @transform_1, window_bounds = array<i64: 16, 96>}, {pipeline_mode = #tpu.pipeline_mode<synchronous>, transform_indices = @transform_2, window_bounds = array<i64: 32, 96>}, {pipeline_mode = #tpu.pipeline_mode<synchronous>, transform_indices = @transform_3, window_bounds = array<i64: 1, 96>}, {pipeline_mode = #tpu.pipeline_mode<synchronous>, transform_indices = @transform_4, window_bounds = array<i64: 1, 32>}, {pipeline_mode = #tpu.pipeline_mode<synchronous>, transform_indices = @transform_5, window_bounds = array<i64: 32, 8>}, {pipeline_mode = #tpu.pipeline_mode<synchronous>, transform_indices = @transform_6, window_bounds = array<i64: 1, 8>}, {pipeline_mode = #tpu.pipeline_mode<synchronous>, transform_indices = @transform_7, window_bounds = array<i64: 16, 8>}]} {
    %c0 = arith.constant 0 : index
    %c0_0 = arith.constant 0 : index
    %0 = vector.load %arg1[%c0, %c0_0] : memref<16x16xf32, #tpu.memory_space<vmem>>, vector<16x16xf32>
    %c0_1 = arith.constant 0 : index
    %c0_2 = arith.constant 0 : index
    %1 = vector.load %arg2[%c0_1, %c0_2] : memref<16x96xf32, #tpu.memory_space<vmem>>, vector<16x96xf32>
    %cst = arith.constant dense<0.000000e+00> : vector<16x96xf32>
    %2 = tpu.matmul %0, %1, %cst {dimension_numbers = #tpu.dot_dimension_numbers<[1], [0], [0], [1], [0, 0, 1, 1], [], []>} : vector<16x16xf32>, vector<16x96xf32>, vector<16x96xf32> -> vector<16x96xf32>
    %c0_3 = arith.constant 0 : index
    %c0_4 = arith.constant 0 : index
    %3 = vector.load %arg4[%c0_3, %c0_4] : memref<1x96xf32, #tpu.memory_space<vmem>>, vector<1x96xf32>
    %4 = vector.broadcast %3 : vector<1x96xf32> to vector<16x96xf32>
    %5 = arith.addf %2, %4 : vector<16x96xf32>
    %c0_5 = arith.constant 0 : index
    %c0_6 = arith.constant 0 : index
    %6 = vector.load %arg9[%c0_5, %c0_6] : memref<16x96xf32, #tpu.memory_space<vmem>>, vector<16x96xf32>
    tpu.vector_store %arg9[%c0_5, %c0_6], %5 {strides = array<i32>} : memref<16x96xf32, #tpu.memory_space<vmem>>, vector<16x96xf32>,
    %c0_7 = arith.constant 0 : index
    %c0_8 = arith.constant 0 : index
    %7 = vector.load %arg3[%c0_7, %c0_8] : memref<32x96xf32, #tpu.memory_space<vmem>>, vector<32x96xf32>
    %c0_9 = arith.constant 0 : index
    %c0_10 = arith.constant 0 : index
    %8 = vector.load %arg5[%c0_9, %c0_10] : memref<1x32xf32, #tpu.memory_space<vmem>>, vector<1x32xf32>
    %cst_11 = arith.constant 0.000000e+00 : f32
    %9 = vector.broadcast %cst_11 : f32 to vector<2x32xf32>
    %c0_12 = arith.constant 0 : index
    %c0_13 = arith.constant 0 : index
    %10 = vector.load %arg9[%c0_12, %c0_13] : memref<16x96xf32, #tpu.memory_space<vmem>>, vector<2x96xf32>
    %cst_14 = arith.constant dense<0.000000e+00> : vector<2x96xf32>
    %11 = tpu.matmul %9, %7, %cst_14 {dimension_numbers = #tpu.dot_dimension_numbers<[1], [0], [0], [1], [0, 0, 1, 1], [], []>} : vector<2x32xf32>, vector<32x96xf32>, vector<2x96xf32> -> vector<2x96xf32>
    %12 = vector.extract_strided_slice %10 {offsets = [0, 0], sizes = [2, 32], strides = [1, 1]} : vector<2x96xf32> to vector<2x32xf32>
    %13 = vector.extract_strided_slice %11 {offsets = [0, 0], sizes = [2, 32], strides = [1, 1]} : vector<2x96xf32> to vector<2x32xf32>
    %14 = arith.addf %12, %13 : vector<2x32xf32>
    %15 = arith.negf %14 : vector<2x32xf32>
    %16 = math.exp %15 : vector<2x32xf32>
    %cst_15 = arith.constant 1.000000e+00 : f32
    %17 = vector.broadcast %cst_15 : f32 to vector<2x32xf32>
    %18 = arith.addf %17, %16 : vector<2x32xf32>
    %19 = arith.divf %17, %18 : vector<2x32xf32>
    %20 = vector.extract_strided_slice %10 {offsets = [0, 32], sizes = [2, 32], strides = [1, 1]} : vector<2x96xf32> to vector<2x32xf32>
    %21 = vector.extract_strided_slice %11 {offsets = [0, 32], sizes = [2, 32], strides = [1, 1]} : vector<2x96xf32> to vector<2x32xf32>
    %22 = arith.addf %20, %21 : vector<2x32xf32>
    %23 = arith.negf %22 : vector<2x32xf32>
    %24 = math.exp %23 : vector<2x32xf32>
    %cst_16 = arith.constant 1.000000e+00 : f32
    %25 = vector.broadcast %cst_16 : f32 to vector<2x32xf32>
    %26 = arith.addf %25, %24 : vector<2x32xf32>
    %27 = arith.divf %25, %26 : vector<2x32xf32>
    %28 = vector.extract_strided_slice %10 {offsets = [0, 64], sizes = [2, 32], strides = [1, 1]} : vector<2x96xf32> to vector<2x32xf32>
    %29 = vector.extract_strided_slice %11 {offsets = [0, 64], sizes = [2, 32], strides = [1, 1]} : vector<2x96xf32> to vector<2x32xf32>
    %30 = vector.broadcast %8 : vector<1x32xf32> to vector<2x32xf32>
    %31 = arith.addf %29, %30 : vector<2x32xf32>
    %32 = arith.mulf %19, %31 : vector<2x32xf32>
    %33 = arith.addf %28, %32 : vector<2x32xf32>
    %34 = math.tanh %33 : vector<2x32xf32>
    %cst_17 = arith.constant 1.000000e+00 : f32
    %35 = vector.broadcast %cst_17 : f32 to vector<2x32xf32>
    %36 = arith.subf %35, %27 : vector<2x32xf32>
    %37 = arith.mulf %36, %34 : vector<2x32xf32>
    %38 = arith.mulf %27, %9 : vector<2x32xf32>
    %39 = arith.addf %37, %38 : vector<2x32xf32>
    %c0_18 = arith.constant 0 : index
    %c0_19 = arith.constant 0 : index
    %40 = vector.load %arg10[%c0_18, %c0_19] : memref<16x32xf32, #tpu.memory_space<vmem>>, vector<2x32xf32>
    tpu.vector_store %arg10[%c0_18, %c0_19], %39 {strides = array<i32>} : memref<16x32xf32, #tpu.memory_space<vmem>>, vector<2x32xf32>,
    %c2 = arith.constant 2 : index
    %c0_20 = arith.constant 0 : index
    %41 = vector.load %arg9[%c2, %c0_20] : memref<16x96xf32, #tpu.memory_space<vmem>>, vector<2x96xf32>
    %cst_21 = arith.constant dense<0.000000e+00> : vector<2x96xf32>
    %42 = tpu.matmul %39, %7, %cst_21 {dimension_numbers = #tpu.dot_dimension_numbers<[1], [0], [0], [1], [0, 0, 1, 1], [], []>} : vector<2x32xf32>, vector<32x96xf32>, vector<2x96xf32> -> vector<2x96xf32>
    %43 = vector.extract_strided_slice %41 {offsets = [0, 0], sizes = [2, 32], strides = [1, 1]} : vector<2x96xf32> to vector<2x32xf32>
    %44 = vector.extract_strided_slice %42 {offsets = [0, 0], sizes = [2, 32], strides = [1, 1]} : vector<2x96xf32> to vector<2x32xf32>
    %45 = arith.addf %43, %44 : vector<2x32xf32>
    %46 = arith.negf %45 : vector<2x32xf32>
    %47 = math.exp %46 : vector<2x32xf32>
    %cst_22 = arith.constant 1.000000e+00 : f32
    %48 = vector.broadcast %cst_22 : f32 to vector<2x32xf32>
    %49 = arith.addf %48, %47 : vector<2x32xf32>
    %50 = arith.divf %48, %49 : vector<2x32xf32>
    %51 = vector.extract_strided_slice %41 {offsets = [0, 32], sizes = [2, 32], strides = [1, 1]} : vector<2x96xf32> to vector<2x32xf32>
    %52 = vector.extract_strided_slice %42 {offsets = [0, 32], sizes = [2, 32], strides = [1, 1]} : vector<2x96xf32> to vector<2x32xf32>
    %53 = arith.addf %51, %52 : vector<2x32xf32>
    %54 = arith.negf %53 : vector<2x32xf32>
    %55 = math.exp %54 : vector<2x32xf32>
    %cst_23 = arith.constant 1.000000e+00 : f32
    %56 = vector.broadcast %cst_23 : f32 to vector<2x32xf32>
    %57 = arith.addf %56, %55 : vector<2x32xf32>
    %58 = arith.divf %56, %57 : vector<2x32xf32>
    %59 = vector.extract_strided_slice %41 {offsets = [0, 64], sizes = [2, 32], strides = [1, 1]} : vector<2x96xf32> to vector<2x32xf32>
    %60 = vector.extract_strided_slice %42 {offsets = [0, 64], sizes = [2, 32], strides = [1, 1]} : vector<2x96xf32> to vector<2x32xf32>
    %61 = vector.broadcast %8 : vector<1x32xf32> to vector<2x32xf32>
    %62 = arith.addf %60, %61 : vector<2x32xf32>
    %63 = arith.mulf %50, %62 : vector<2x32xf32>
    %64 = arith.addf %59, %63 : vector<2x32xf32>
    %65 = math.tanh %64 : vector<2x32xf32>
    %cst_24 = arith.constant 1.000000e+00 : f32
    %66 = vector.broadcast %cst_24 : f32 to vector<2x32xf32>
    %67 = arith.subf %66, %58 : vector<2x32xf32>
    %68 = arith.mulf %67, %65 : vector<2x32xf32>
    %69 = arith.mulf %58, %39 : vector<2x32xf32>
    %70 = arith.addf %68, %69 : vector<2x32xf32>
    %c2_25 = arith.constant 2 : index
    %c0_26 = arith.constant 0 : index
    %71 = vector.load %arg10[%c2_25, %c0_26] : memref<16x32xf32, #tpu.memory_space<vmem>>, vector<2x32xf32>
    tpu.vector_store %arg10[%c2_25, %c0_26], %70 {strides = array<i32>} : memref<16x32xf32, #tpu.memory_space<vmem>>, vector<2x32xf32>,
    %c4 = arith.constant 4 : index
    %c0_27 = arith.constant 0 : index
    %72 = vector.load %arg9[%c4, %c0_27] : memref<16x96xf32, #tpu.memory_space<vmem>>, vector<2x96xf32>
    %cst_28 = arith.constant dense<0.000000e+00> : vector<2x96xf32>
    %73 = tpu.matmul %70, %7, %cst_28 {dimension_numbers = #tpu.dot_dimension_numbers<[1], [0], [0], [1], [0, 0, 1, 1], [], []>} : vector<2x32xf32>, vector<32x96xf32>, vector<2x96xf32> -> vector<2x96xf32>
    %74 = vector.extract_strided_slice %72 {offsets = [0, 0], sizes = [2, 32], strides = [1, 1]} : vector<2x96xf32> to vector<2x32xf32>
    %75 = vector.extract_strided_slice %73 {offsets = [0, 0], sizes = [2, 32], strides = [1, 1]} : vector<2x96xf32> to vector<2x32xf32>
    %76 = arith.addf %74, %75 : vector<2x32xf32>
    %77 = arith.negf %76 : vector<2x32xf32>
    %78 = math.exp %77 : vector<2x32xf32>
    %cst_29 = arith.constant 1.000000e+00 : f32
    %79 = vector.broadcast %cst_29 : f32 to vector<2x32xf32>
    %80 = arith.addf %79, %78 : vector<2x32xf32>
    %81 = arith.divf %79, %80 : vector<2x32xf32>
    %82 = vector.extract_strided_slice %72 {offsets = [0, 32], sizes = [2, 32], strides = [1, 1]} : vector<2x96xf32> to vector<2x32xf32>
    %83 = vector.extract_strided_slice %73 {offsets = [0, 32], sizes = [2, 32], strides = [1, 1]} : vector<2x96xf32> to vector<2x32xf32>
    %84 = arith.addf %82, %83 : vector<2x32xf32>
    %85 = arith.negf %84 : vector<2x32xf32>
    %86 = math.exp %85 : vector<2x32xf32>
    %cst_30 = arith.constant 1.000000e+00 : f32
    %87 = vector.broadcast %cst_30 : f32 to vector<2x32xf32>
    %88 = arith.addf %87, %86 : vector<2x32xf32>
    %89 = arith.divf %87, %88 : vector<2x32xf32>
    %90 = vector.extract_strided_slice %72 {offsets = [0, 64], sizes = [2, 32], strides = [1, 1]} : vector<2x96xf32> to vector<2x32xf32>
    %91 = vector.extract_strided_slice %73 {offsets = [0, 64], sizes = [2, 32], strides = [1, 1]} : vector<2x96xf32> to vector<2x32xf32>
    %92 = vector.broadcast %8 : vector<1x32xf32> to vector<2x32xf32>
    %93 = arith.addf %91, %92 : vector<2x32xf32>
    %94 = arith.mulf %81, %93 : vector<2x32xf32>
    %95 = arith.addf %90, %94 : vector<2x32xf32>
    %96 = math.tanh %95 : vector<2x32xf32>
    %cst_31 = arith.constant 1.000000e+00 : f32
    %97 = vector.broadcast %cst_31 : f32 to vector<2x32xf32>
    %98 = arith.subf %97, %89 : vector<2x32xf32>
    %99 = arith.mulf %98, %96 : vector<2x32xf32>
    %100 = arith.mulf %89, %70 : vector<2x32xf32>
    %101 = arith.addf %99, %100 : vector<2x32xf32>
    %c4_32 = arith.constant 4 : index
    %c0_33 = arith.constant 0 : index
    %102 = vector.load %arg10[%c4_32, %c0_33] : memref<16x32xf32, #tpu.memory_space<vmem>>, vector<2x32xf32>
    tpu.vector_store %arg10[%c4_32, %c0_33], %101 {strides = array<i32>} : memref<16x32xf32, #tpu.memory_space<vmem>>, vector<2x32xf32>,
    %c6 = arith.constant 6 : index
    %c0_34 = arith.constant 0 : index
    %103 = vector.load %arg9[%c6, %c0_34] : memref<16x96xf32, #tpu.memory_space<vmem>>, vector<2x96xf32>
    %cst_35 = arith.constant dense<0.000000e+00> : vector<2x96xf32>
    %104 = tpu.matmul %101, %7, %cst_35 {dimension_numbers = #tpu.dot_dimension_numbers<[1], [0], [0], [1], [0, 0, 1, 1], [], []>} : vector<2x32xf32>, vector<32x96xf32>, vector<2x96xf32> -> vector<2x96xf32>
    %105 = vector.extract_strided_slice %103 {offsets = [0, 0], sizes = [2, 32], strides = [1, 1]} : vector<2x96xf32> to vector<2x32xf32>
    %106 = vector.extract_strided_slice %104 {offsets = [0, 0], sizes = [2, 32], strides = [1, 1]} : vector<2x96xf32> to vector<2x32xf32>
    %107 = arith.addf %105, %106 : vector<2x32xf32>
    %108 = arith.negf %107 : vector<2x32xf32>
    %109 = math.exp %108 : vector<2x32xf32>
    %cst_36 = arith.constant 1.000000e+00 : f32
    %110 = vector.broadcast %cst_36 : f32 to vector<2x32xf32>
    %111 = arith.addf %110, %109 : vector<2x32xf32>
    %112 = arith.divf %110, %111 : vector<2x32xf32>
    %113 = vector.extract_strided_slice %103 {offsets = [0, 32], sizes = [2, 32], strides = [1, 1]} : vector<2x96xf32> to vector<2x32xf32>
    %114 = vector.extract_strided_slice %104 {offsets = [0, 32], sizes = [2, 32], strides = [1, 1]} : vector<2x96xf32> to vector<2x32xf32>
    %115 = arith.addf %113, %114 : vector<2x32xf32>
    %116 = arith.negf %115 : vector<2x32xf32>
    %117 = math.exp %116 : vector<2x32xf32>
    %cst_37 = arith.constant 1.000000e+00 : f32
    %118 = vector.broadcast %cst_37 : f32 to vector<2x32xf32>
    %119 = arith.addf %118, %117 : vector<2x32xf32>
    %120 = arith.divf %118, %119 : vector<2x32xf32>
    %121 = vector.extract_strided_slice %103 {offsets = [0, 64], sizes = [2, 32], strides = [1, 1]} : vector<2x96xf32> to vector<2x32xf32>
    %122 = vector.extract_strided_slice %104 {offsets = [0, 64], sizes = [2, 32], strides = [1, 1]} : vector<2x96xf32> to vector<2x32xf32>
    %123 = vector.broadcast %8 : vector<1x32xf32> to vector<2x32xf32>
    %124 = arith.addf %122, %123 : vector<2x32xf32>
    %125 = arith.mulf %112, %124 : vector<2x32xf32>
    %126 = arith.addf %121, %125 : vector<2x32xf32>
    %127 = math.tanh %126 : vector<2x32xf32>
    %cst_38 = arith.constant 1.000000e+00 : f32
    %128 = vector.broadcast %cst_38 : f32 to vector<2x32xf32>
    %129 = arith.subf %128, %120 : vector<2x32xf32>
    %130 = arith.mulf %129, %127 : vector<2x32xf32>
    %131 = arith.mulf %120, %101 : vector<2x32xf32>
    %132 = arith.addf %130, %131 : vector<2x32xf32>
    %c6_39 = arith.constant 6 : index
    %c0_40 = arith.constant 0 : index
    %133 = vector.load %arg10[%c6_39, %c0_40] : memref<16x32xf32, #tpu.memory_space<vmem>>, vector<2x32xf32>
    tpu.vector_store %arg10[%c6_39, %c0_40], %132 {strides = array<i32>} : memref<16x32xf32, #tpu.memory_space<vmem>>, vector<2x32xf32>,
    %c8 = arith.constant 8 : index
    %c0_41 = arith.constant 0 : index
    %134 = vector.load %arg9[%c8, %c0_41] : memref<16x96xf32, #tpu.memory_space<vmem>>, vector<2x96xf32>
    %cst_42 = arith.constant dense<0.000000e+00> : vector<2x96xf32>
    %135 = tpu.matmul %132, %7, %cst_42 {dimension_numbers = #tpu.dot_dimension_numbers<[1], [0], [0], [1], [0, 0, 1, 1], [], []>} : vector<2x32xf32>, vector<32x96xf32>, vector<2x96xf32> -> vector<2x96xf32>
    %136 = vector.extract_strided_slice %134 {offsets = [0, 0], sizes = [2, 32], strides = [1, 1]} : vector<2x96xf32> to vector<2x32xf32>
    %137 = vector.extract_strided_slice %135 {offsets = [0, 0], sizes = [2, 32], strides = [1, 1]} : vector<2x96xf32> to vector<2x32xf32>
    %138 = arith.addf %136, %137 : vector<2x32xf32>
    %139 = arith.negf %138 : vector<2x32xf32>
    %140 = math.exp %139 : vector<2x32xf32>
    %cst_43 = arith.constant 1.000000e+00 : f32
    %141 = vector.broadcast %cst_43 : f32 to vector<2x32xf32>
    %142 = arith.addf %141, %140 : vector<2x32xf32>
    %143 = arith.divf %141, %142 : vector<2x32xf32>
    %144 = vector.extract_strided_slice %134 {offsets = [0, 32], sizes = [2, 32], strides = [1, 1]} : vector<2x96xf32> to vector<2x32xf32>
    %145 = vector.extract_strided_slice %135 {offsets = [0, 32], sizes = [2, 32], strides = [1, 1]} : vector<2x96xf32> to vector<2x32xf32>
    %146 = arith.addf %144, %145 : vector<2x32xf32>
    %147 = arith.negf %146 : vector<2x32xf32>
    %148 = math.exp %147 : vector<2x32xf32>
    %cst_44 = arith.constant 1.000000e+00 : f32
    %149 = vector.broadcast %cst_44 : f32 to vector<2x32xf32>
    %150 = arith.addf %149, %148 : vector<2x32xf32>
    %151 = arith.divf %149, %150 : vector<2x32xf32>
    %152 = vector.extract_strided_slice %134 {offsets = [0, 64], sizes = [2, 32], strides = [1, 1]} : vector<2x96xf32> to vector<2x32xf32>
    %153 = vector.extract_strided_slice %135 {offsets = [0, 64], sizes = [2, 32], strides = [1, 1]} : vector<2x96xf32> to vector<2x32xf32>
    %154 = vector.broadcast %8 : vector<1x32xf32> to vector<2x32xf32>
    %155 = arith.addf %153, %154 : vector<2x32xf32>
    %156 = arith.mulf %143, %155 : vector<2x32xf32>
    %157 = arith.addf %152, %156 : vector<2x32xf32>
    %158 = math.tanh %157 : vector<2x32xf32>
    %cst_45 = arith.constant 1.000000e+00 : f32
    %159 = vector.broadcast %cst_45 : f32 to vector<2x32xf32>
    %160 = arith.subf %159, %151 : vector<2x32xf32>
    %161 = arith.mulf %160, %158 : vector<2x32xf32>
    %162 = arith.mulf %151, %132 : vector<2x32xf32>
    %163 = arith.addf %161, %162 : vector<2x32xf32>
    %c8_46 = arith.constant 8 : index
    %c0_47 = arith.constant 0 : index
    %164 = vector.load %arg10[%c8_46, %c0_47] : memref<16x32xf32, #tpu.memory_space<vmem>>, vector<2x32xf32>
    tpu.vector_store %arg10[%c8_46, %c0_47], %163 {strides = array<i32>} : memref<16x32xf32, #tpu.memory_space<vmem>>, vector<2x32xf32>,
    %c10 = arith.constant 10 : index
    %c0_48 = arith.constant 0 : index
    %165 = vector.load %arg9[%c10, %c0_48] : memref<16x96xf32, #tpu.memory_space<vmem>>, vector<2x96xf32>
    %cst_49 = arith.constant dense<0.000000e+00> : vector<2x96xf32>
    %166 = tpu.matmul %163, %7, %cst_49 {dimension_numbers = #tpu.dot_dimension_numbers<[1], [0], [0], [1], [0, 0, 1, 1], [], []>} : vector<2x32xf32>, vector<32x96xf32>, vector<2x96xf32> -> vector<2x96xf32>
    %167 = vector.extract_strided_slice %165 {offsets = [0, 0], sizes = [2, 32], strides = [1, 1]} : vector<2x96xf32> to vector<2x32xf32>
    %168 = vector.extract_strided_slice %166 {offsets = [0, 0], sizes = [2, 32], strides = [1, 1]} : vector<2x96xf32> to vector<2x32xf32>
    %169 = arith.addf %167, %168 : vector<2x32xf32>
    %170 = arith.negf %169 : vector<2x32xf32>
    %171 = math.exp %170 : vector<2x32xf32>
    %cst_50 = arith.constant 1.000000e+00 : f32
    %172 = vector.broadcast %cst_50 : f32 to vector<2x32xf32>
    %173 = arith.addf %172, %171 : vector<2x32xf32>
    %174 = arith.divf %172, %173 : vector<2x32xf32>
    %175 = vector.extract_strided_slice %165 {offsets = [0, 32], sizes = [2, 32], strides = [1, 1]} : vector<2x96xf32> to vector<2x32xf32>
    %176 = vector.extract_strided_slice %166 {offsets = [0, 32], sizes = [2, 32], strides = [1, 1]} : vector<2x96xf32> to vector<2x32xf32>
    %177 = arith.addf %175, %176 : vector<2x32xf32>
    %178 = arith.negf %177 : vector<2x32xf32>
    %179 = math.exp %178 : vector<2x32xf32>
    %cst_51 = arith.constant 1.000000e+00 : f32
    %180 = vector.broadcast %cst_51 : f32 to vector<2x32xf32>
    %181 = arith.addf %180, %179 : vector<2x32xf32>
    %182 = arith.divf %180, %181 : vector<2x32xf32>
    %183 = vector.extract_strided_slice %165 {offsets = [0, 64], sizes = [2, 32], strides = [1, 1]} : vector<2x96xf32> to vector<2x32xf32>
    %184 = vector.extract_strided_slice %166 {offsets = [0, 64], sizes = [2, 32], strides = [1, 1]} : vector<2x96xf32> to vector<2x32xf32>
    %185 = vector.broadcast %8 : vector<1x32xf32> to vector<2x32xf32>
    %186 = arith.addf %184, %185 : vector<2x32xf32>
    %187 = arith.mulf %174, %186 : vector<2x32xf32>
    %188 = arith.addf %183, %187 : vector<2x32xf32>
    %189 = math.tanh %188 : vector<2x32xf32>
    %cst_52 = arith.constant 1.000000e+00 : f32
    %190 = vector.broadcast %cst_52 : f32 to vector<2x32xf32>
    %191 = arith.subf %190, %182 : vector<2x32xf32>
    %192 = arith.mulf %191, %189 : vector<2x32xf32>
    %193 = arith.mulf %182, %163 : vector<2x32xf32>
    %194 = arith.addf %192, %193 : vector<2x32xf32>
    %c10_53 = arith.constant 10 : index
    %c0_54 = arith.constant 0 : index
    %195 = vector.load %arg10[%c10_53, %c0_54] : memref<16x32xf32, #tpu.memory_space<vmem>>, vector<2x32xf32>
    tpu.vector_store %arg10[%c10_53, %c0_54], %194 {strides = array<i32>} : memref<16x32xf32, #tpu.memory_space<vmem>>, vector<2x32xf32>,
    %c12 = arith.constant 12 : index
    %c0_55 = arith.constant 0 : index
    %196 = vector.load %arg9[%c12, %c0_55] : memref<16x96xf32, #tpu.memory_space<vmem>>, vector<2x96xf32>
    %cst_56 = arith.constant dense<0.000000e+00> : vector<2x96xf32>
    %197 = tpu.matmul %194, %7, %cst_56 {dimension_numbers = #tpu.dot_dimension_numbers<[1], [0], [0], [1], [0, 0, 1, 1], [], []>} : vector<2x32xf32>, vector<32x96xf32>, vector<2x96xf32> -> vector<2x96xf32>
    %198 = vector.extract_strided_slice %196 {offsets = [0, 0], sizes = [2, 32], strides = [1, 1]} : vector<2x96xf32> to vector<2x32xf32>
    %199 = vector.extract_strided_slice %197 {offsets = [0, 0], sizes = [2, 32], strides = [1, 1]} : vector<2x96xf32> to vector<2x32xf32>
    %200 = arith.addf %198, %199 : vector<2x32xf32>
    %201 = arith.negf %200 : vector<2x32xf32>
    %202 = math.exp %201 : vector<2x32xf32>
    %cst_57 = arith.constant 1.000000e+00 : f32
    %203 = vector.broadcast %cst_57 : f32 to vector<2x32xf32>
    %204 = arith.addf %203, %202 : vector<2x32xf32>
    %205 = arith.divf %203, %204 : vector<2x32xf32>
    %206 = vector.extract_strided_slice %196 {offsets = [0, 32], sizes = [2, 32], strides = [1, 1]} : vector<2x96xf32> to vector<2x32xf32>
    %207 = vector.extract_strided_slice %197 {offsets = [0, 32], sizes = [2, 32], strides = [1, 1]} : vector<2x96xf32> to vector<2x32xf32>
    %208 = arith.addf %206, %207 : vector<2x32xf32>
    %209 = arith.negf %208 : vector<2x32xf32>
    %210 = math.exp %209 : vector<2x32xf32>
    %cst_58 = arith.constant 1.000000e+00 : f32
    %211 = vector.broadcast %cst_58 : f32 to vector<2x32xf32>
    %212 = arith.addf %211, %210 : vector<2x32xf32>
    %213 = arith.divf %211, %212 : vector<2x32xf32>
    %214 = vector.extract_strided_slice %196 {offsets = [0, 64], sizes = [2, 32], strides = [1, 1]} : vector<2x96xf32> to vector<2x32xf32>
    %215 = vector.extract_strided_slice %197 {offsets = [0, 64], sizes = [2, 32], strides = [1, 1]} : vector<2x96xf32> to vector<2x32xf32>
    %216 = vector.broadcast %8 : vector<1x32xf32> to vector<2x32xf32>
    %217 = arith.addf %215, %216 : vector<2x32xf32>
    %218 = arith.mulf %205, %217 : vector<2x32xf32>
    %219 = arith.addf %214, %218 : vector<2x32xf32>
    %220 = math.tanh %219 : vector<2x32xf32>
    %cst_59 = arith.constant 1.000000e+00 : f32
    %221 = vector.broadcast %cst_59 : f32 to vector<2x32xf32>
    %222 = arith.subf %221, %213 : vector<2x32xf32>
    %223 = arith.mulf %222, %220 : vector<2x32xf32>
    %224 = arith.mulf %213, %194 : vector<2x32xf32>
    %225 = arith.addf %223, %224 : vector<2x32xf32>
    %c12_60 = arith.constant 12 : index
    %c0_61 = arith.constant 0 : index
    %226 = vector.load %arg10[%c12_60, %c0_61] : memref<16x32xf32, #tpu.memory_space<vmem>>, vector<2x32xf32>
    tpu.vector_store %arg10[%c12_60, %c0_61], %225 {strides = array<i32>} : memref<16x32xf32, #tpu.memory_space<vmem>>, vector<2x32xf32>,
    %c14 = arith.constant 14 : index
    %c0_62 = arith.constant 0 : index
    %227 = vector.load %arg9[%c14, %c0_62] : memref<16x96xf32, #tpu.memory_space<vmem>>, vector<2x96xf32>
    %cst_63 = arith.constant dense<0.000000e+00> : vector<2x96xf32>
    %228 = tpu.matmul %225, %7, %cst_63 {dimension_numbers = #tpu.dot_dimension_numbers<[1], [0], [0], [1], [0, 0, 1, 1], [], []>} : vector<2x32xf32>, vector<32x96xf32>, vector<2x96xf32> -> vector<2x96xf32>
    %229 = vector.extract_strided_slice %227 {offsets = [0, 0], sizes = [2, 32], strides = [1, 1]} : vector<2x96xf32> to vector<2x32xf32>
    %230 = vector.extract_strided_slice %228 {offsets = [0, 0], sizes = [2, 32], strides = [1, 1]} : vector<2x96xf32> to vector<2x32xf32>
    %231 = arith.addf %229, %230 : vector<2x32xf32>
    %232 = arith.negf %231 : vector<2x32xf32>
    %233 = math.exp %232 : vector<2x32xf32>
    %cst_64 = arith.constant 1.000000e+00 : f32
    %234 = vector.broadcast %cst_64 : f32 to vector<2x32xf32>
    %235 = arith.addf %234, %233 : vector<2x32xf32>
    %236 = arith.divf %234, %235 : vector<2x32xf32>
    %237 = vector.extract_strided_slice %227 {offsets = [0, 32], sizes = [2, 32], strides = [1, 1]} : vector<2x96xf32> to vector<2x32xf32>
    %238 = vector.extract_strided_slice %228 {offsets = [0, 32], sizes = [2, 32], strides = [1, 1]} : vector<2x96xf32> to vector<2x32xf32>
    %239 = arith.addf %237, %238 : vector<2x32xf32>
    %240 = arith.negf %239 : vector<2x32xf32>
    %241 = math.exp %240 : vector<2x32xf32>
    %cst_65 = arith.constant 1.000000e+00 : f32
    %242 = vector.broadcast %cst_65 : f32 to vector<2x32xf32>
    %243 = arith.addf %242, %241 : vector<2x32xf32>
    %244 = arith.divf %242, %243 : vector<2x32xf32>
    %245 = vector.extract_strided_slice %227 {offsets = [0, 64], sizes = [2, 32], strides = [1, 1]} : vector<2x96xf32> to vector<2x32xf32>
    %246 = vector.extract_strided_slice %228 {offsets = [0, 64], sizes = [2, 32], strides = [1, 1]} : vector<2x96xf32> to vector<2x32xf32>
    %247 = vector.broadcast %8 : vector<1x32xf32> to vector<2x32xf32>
    %248 = arith.addf %246, %247 : vector<2x32xf32>
    %249 = arith.mulf %236, %248 : vector<2x32xf32>
    %250 = arith.addf %245, %249 : vector<2x32xf32>
    %251 = math.tanh %250 : vector<2x32xf32>
    %cst_66 = arith.constant 1.000000e+00 : f32
    %252 = vector.broadcast %cst_66 : f32 to vector<2x32xf32>
    %253 = arith.subf %252, %244 : vector<2x32xf32>
    %254 = arith.mulf %253, %251 : vector<2x32xf32>
    %255 = arith.mulf %244, %225 : vector<2x32xf32>
    %256 = arith.addf %254, %255 : vector<2x32xf32>
    %c14_67 = arith.constant 14 : index
    %c0_68 = arith.constant 0 : index
    %257 = vector.load %arg10[%c14_67, %c0_68] : memref<16x32xf32, #tpu.memory_space<vmem>>, vector<2x32xf32>
    tpu.vector_store %arg10[%c14_67, %c0_68], %256 {strides = array<i32>} : memref<16x32xf32, #tpu.memory_space<vmem>>, vector<2x32xf32>,
    %c0_69 = arith.constant 0 : index
    %c0_70 = arith.constant 0 : index
    %258 = vector.load %arg10[%c0_69, %c0_70] : memref<16x32xf32, #tpu.memory_space<vmem>>, vector<16x32xf32>
    %c0_71 = arith.constant 0 : index
    %c0_72 = arith.constant 0 : index
    %259 = vector.load %arg6[%c0_71, %c0_72] : memref<32x8xf32, #tpu.memory_space<vmem>>, vector<32x8xf32>
    %cst_73 = arith.constant dense<0.000000e+00> : vector<16x8xf32>
    %260 = tpu.matmul %258, %259, %cst_73 {dimension_numbers = #tpu.dot_dimension_numbers<[1], [0], [0], [1], [0, 0, 1, 1], [], []>} : vector<16x32xf32>, vector<32x8xf32>, vector<16x8xf32> -> vector<16x8xf32>
    %c0_74 = arith.constant 0 : index
    %c0_75 = arith.constant 0 : index
    %261 = vector.load %arg7[%c0_74, %c0_75] : memref<1x8xf32, #tpu.memory_space<vmem>>, vector<1x8xf32>
    %262 = vector.broadcast %261 : vector<1x8xf32> to vector<16x8xf32>
    %263 = arith.addf %260, %262 : vector<16x8xf32>
    %c0_76 = arith.constant 0 : index
    %c0_77 = arith.constant 0 : index
    %264 = vector.load %arg8[%c0_76, %c0_77] : memref<16x8xf32, #tpu.memory_space<vmem>>, vector<16x8xf32>
    tpu.vector_store %arg8[%c0_76, %c0_77], %263 {strides = array<i32>} : memref<16x8xf32, #tpu.memory_space<vmem>>, vector<16x8xf32>,
    return
  }
  func.func @transform_0(%arg0: i32) -> (i32, i32) {
    %c0_i32 = arith.constant 0 : i32
    %c0_i32_0 = arith.constant 0 : i32
    %c0_i32_1 = arith.constant 0 : i32
    return %c0_i32, %c0_i32_0 : i32, i32
  }
  func.func @transform_1(%arg0: i32) -> (i32, i32) {
    %c0_i32 = arith.constant 0 : i32
    %c0_i32_0 = arith.constant 0 : i32
    %c0_i32_1 = arith.constant 0 : i32
    return %c0_i32, %c0_i32_0 : i32, i32
  }
  func.func @transform_2(%arg0: i32) -> (i32, i32) {
    %c0_i32 = arith.constant 0 : i32
    %c0_i32_0 = arith.constant 0 : i32
    %c0_i32_1 = arith.constant 0 : i32
    return %c0_i32, %c0_i32_0 : i32, i32
  }
  func.func @transform_3(%arg0: i32) -> (i32, i32) {
    %c0_i32 = arith.constant 0 : i32
    %c0_i32_0 = arith.constant 0 : i32
    %c0_i32_1 = arith.constant 0 : i32
    return %c0_i32, %c0_i32_0 : i32, i32
  }
  func.func @transform_4(%arg0: i32) -> (i32, i32) {
    %c0_i32 = arith.constant 0 : i32
    %c0_i32_0 = arith.constant 0 : i32
    %c0_i32_1 = arith.constant 0 : i32
    return %c0_i32, %c0_i32_0 : i32, i32
  }
  func.func @transform_5(%arg0: i32) -> (i32, i32) {
    %c0_i32 = arith.constant 0 : i32
    %c0_i32_0 = arith.constant 0 : i32
    %c0_i32_1 = arith.constant 0 : i32
    return %c0_i32, %c0_i32_0 : i32, i32
  }
  func.func @transform_6(%arg0: i32) -> (i32, i32) {
    %c0_i32 = arith.constant 0 : i32
    %c0_i32_0 = arith.constant 0 : i32
    %c0_i32_1 = arith.constant 0 : i32
    return %c0_i32, %c0_i32_0 : i32, i32
  }
  func.func @transform_7(%arg0: i32) -> (i32, i32) {
    %c0_i32 = arith.constant 0 : i32
    %c0_i32_0 = arith.constant 0 : i32
    %c0_i32_1 = arith.constant 0 : i32
    return %c0_i32, %c0_i32_0 : i32, i32
  }
}

</mosaic_0001>

<llo_original>
// kernel: tpu_custom_call.1
$region0: #{tpu_custom_call.1}
  #allocation0 [shape = 'u32[]', space=smem, size = 0x4, offset = 0x4, fixed_abs, tag = 'smem constant byte address 0x4 - core index']
  #allocation1 [shape = 'u32[72,128]{1,0:T(1,128)}', space=vmem, size = 0x9000, scoped, tag = 'internal scratch']
  #allocation2 [shape = 'f32[16,96]{1,0:T(8,128)}', space=vmem, size = 0x2000, scoped, tag = 'scratch operand']
  #allocation3 [shape = 'f32[16,32]{1,0:T(8,128)}', space=vmem, size = 0x2000, scoped, tag = 'scratch operand']
  %s0 = inlined_call_operand.hbm [shape: f32[16,16], index: 0, kind: input, shape index: {}]
  %s1 = inlined_call_operand.hbm [shape: f32[16,96], index: 1, kind: input, shape index: {}]
  %s2 = inlined_call_operand.vmem [shape: f32[32,96], index: 2, kind: input, shape index: {}]
  %s3 = inlined_call_operand.vmem [shape: f32[1,96], index: 3, kind: input, shape index: {}]
  %s4 = inlined_call_operand.vmem [shape: f32[1,32], index: 4, kind: input, shape index: {}]
  %s5 = inlined_call_operand.vmem [shape: f32[32,8], index: 5, kind: input, shape index: {}]
  %s6 = inlined_call_operand.vmem [shape: f32[1,8], index: 6, kind: input, shape index: {}]
  %s7 = inlined_call_operand.vmem [shape: f32[16,8], index: 7, kind: output, shape index: {}]
  %s8 = sld [smem:[#allocation0]]
  $region46: #{tpu_custom_call.1} parent=0
    _
  %s10 = ssub.s32 1, %s8
  %s11 = scalar_select 0, %s10, %s8
  $region1: #{tpu_custom_call.1} parent=0
    #allocation4 [shape = 'u8[8192]{0}', space=vmem, size = 0x2000, scoped, tag = 'input window, operand 0, single buffered']
    #allocation5 [shape = 's32[1]{0}', space=sflag, size = 0x4, scoped, tag = 'scoped memory for tpu_custom_call.1']
    #allocation6 [shape = 'u8[8192]{0}', space=vmem, size = 0x2000, scoped, tag = 'input window, operand 1, single buffered']
    #allocation7 [shape = 's32[1]{0}', space=sflag, size = 0x4, scoped, tag = 'scoped memory for tpu_custom_call.1']
    %12 = vsyncpa [#allocation5], 0
    %13 = vsyncpa [#allocation7], 0
    // Predicated region
    $region2: #{tpu_custom_call.1} parent=1 // pred_check
      _
    $region3: #{tpu_custom_call.1} parent=1 // pred_check_branch
      %15 = sbr.rel (0) target = $region5
    $region4: #{tpu_custom_call.1} parent=1 // pred_region
      %17 = vsyncadd [#allocation5], 0
      %s18 = sshll.u32 %s0, 4
      %s19 = int_to_ptr.hbm [resolvable:$true] %s18
      %s20 = sshll.u32 [#allocation4], 4
      %s21 = int_to_ptr.vmem [resolvable:$true] %s20
      %26 = dma.hbm_to_vmem [thread:$0]  %s19, 256, %s21, [#allocation5], 128, 128, 8
    $region5: #{tpu_custom_call.1} parent=1 // pred_fallthru
      _
    // Predicated region
    $region6: #{tpu_custom_call.1} parent=1 // pred_check
      _
    $region7: #{tpu_custom_call.1} parent=1 // pred_check_branch
      %28 = sbr.rel (0) target = $region9
    $region8: #{tpu_custom_call.1} parent=1 // pred_region
      %30 = vsyncadd [#allocation7], 0
      %s31 = sshll.u32 %s1, 4
      %s32 = int_to_ptr.hbm [resolvable:$true] %s31
      %s33 = sshll.u32 [#allocation6], 4
      %s34 = int_to_ptr.vmem [resolvable:$true] %s33
      %39 = dma.hbm_to_vmem [thread:$0]  %s32, 256, %s34, [#allocation7], 128, 128, 8
    $region9: #{tpu_custom_call.1} parent=1 // pred_fallthru
      _
    // Predicated region
    $region10: #{tpu_custom_call.1} parent=1 // pred_check
      _
    $region11: #{tpu_custom_call.1} parent=1 // pred_check_branch
      %41 = sbr.rel (0) target = $region13
    $region12: #{tpu_custom_call.1} parent=1 // pred_region
      _
    $region13: #{tpu_custom_call.1} parent=1 // pred_fallthru
      _
    // Predicated region
    $region14: #{tpu_custom_call.1} parent=1 // pred_check
      _
    $region15: #{tpu_custom_call.1} parent=1 // pred_check_branch
      %43 = sbr.rel (0) target = $region17
    $region16: #{tpu_custom_call.1} parent=1 // pred_region
      _
    $region17: #{tpu_custom_call.1} parent=1 // pred_fallthru
      _
    // Predicated region
    $region18: #{tpu_custom_call.1} parent=1 // pred_check
      _
    $region19: #{tpu_custom_call.1} parent=1 // pred_check_branch
      %45 = sbr.rel (0) target = $region21
    $region20: #{tpu_custom_call.1} parent=1 // pred_region
      _
    $region21: #{tpu_custom_call.1} parent=1 // pred_fallthru
      _
    // Predicated region
    $region22: #{tpu_custom_call.1} parent=1 // pred_check
      _
    $region23: #{tpu_custom_call.1} parent=1 // pred_check_branch
      %47 = sbr.rel (0) target = $region25
    $region24: #{tpu_custom_call.1} parent=1 // pred_region
      _
    $region25: #{tpu_custom_call.1} parent=1 // pred_fallthru
      _
    // Predicated region
    $region26: #{tpu_custom_call.1} parent=1 // pred_check
      _
    $region27: #{tpu_custom_call.1} parent=1 // pred_check_branch
      %49 = sbr.rel (0) target = $region29
    $region28: #{tpu_custom_call.1} parent=1 // pred_region
      _
    $region29: #{tpu_custom_call.1} parent=1 // pred_fallthru
      _
    // Predicated region
    $region30: #{tpu_custom_call.1} parent=1 // pred_check
      _
    $region31: #{tpu_custom_call.1} parent=1 // pred_check_branch
      %51 = sbr.rel (0) target = $region33
    $region32: #{tpu_custom_call.1} parent=1 // pred_region
      %53 = dma.done [#allocation5], 256
    $region33: #{tpu_custom_call.1} parent=1 // pred_fallthru
      _
    // Predicated region
    $region34: #{tpu_custom_call.1} parent=1 // pred_check
      _
    $region35: #{tpu_custom_call.1} parent=1 // pred_check_branch
      %55 = sbr.rel (0) target = $region37
    $region36: #{tpu_custom_call.1} parent=1 // pred_region
      %57 = dma.done [#allocation7], 256
    $region37: #{tpu_custom_call.1} parent=1 // pred_fallthru
      _
    %v58 = vld [vmem:[#allocation4] sm:$0xff]
    %v59 = vld [vmem:[#allocation4 + $0x8] sm:$0xff]
    %v60 = vld [vmem:[#allocation6] sm:$0xff]
    %v61 = vld [vmem:[#allocation6 + $0x8] sm:$0xff]
    %v62 = vld [vmem:[%s3] sm:$0x1]
    %v64 = vperm.slane %v62, 0
    %vm66 = vcmask 130048
    %v68 = vsel %vm66, %v58, 0
    %v71 = vsel %vm66, %v59, 0
    %73 = vmatpush.msra.mxu0 0.0
    %74 = vmatpush.msra.mxu0 0.0
    %75 = vmatpush.msra.mxu0 0.0
    %76 = vmatpush.msra.mxu0 0.0
    %77 = vmatpush.msra.mxu0 0.0
    %78 = vmatpush.msra.mxu0 0.0
    %79 = vmatpush.msra.mxu0 0.0
    %80 = vmatpush.msra.mxu0 0.0
    %81 = vmatpush.msra.mxu0 0.0
    %82 = vmatpush.msra.mxu0 0.0
    %83 = vmatpush.msra.mxu0 0.0
    %84 = vmatpush.msra.mxu0 0.0
    %85 = vmatpush.msra.mxu0 0.0
    %86 = vmatpush.msra.mxu0 0.0
    %87 = vmatpush.msra.mxu0 %v61
    %88 = vmatpush.msra.mxu0 %v60
    %89 = vmatmul.f32.gmra.mxu0 %v68
    %v90 = vpop.f32.mrf.mxu0
    %v91 = vadd.f32 %v64, %v90
    %92 = vmatmul.f32.gmra.mxu0 %v71
    %v93 = vpop.f32.mrf.mxu0
    %v94 = vadd.f32 %v64, %v93
    %95 = vdwg.mxu0
    %vm96 = vcmask 785408
    %97 = vst.msk [vmem:[#allocation2] sm:$0xff] %vm96, %v91
    %98 = vst.msk [vmem:[#allocation2 + $0x8] sm:$0xff] %vm96, %v94
    %v99 = vld [vmem:[%s2] sm:$0xff]
    %v100 = vld [vmem:[%s2 + $0x8] sm:$0xff]
    %v101 = vld [vmem:[%s2 + $0x10] sm:$0xff]
    %v102 = vld [vmem:[%s2 + $0x18] sm:$0xff]
    %v103 = vld [vmem:[%s4] sm:$0x1]
    %v104 = vld [vmem:[#allocation2] sm:$0x3]
    %vm105 = vcmask 261120
    %v107 = vsel %vm105, 0.0, 0
    %109 = vmatpush.msra.mxu0 0.0
    %110 = vmatpush.msra.mxu0 0.0
    %111 = vmatpush.msra.mxu0 0.0
    %112 = vmatpush.msra.mxu0 0.0
    %113 = vmatpush.msra.mxu0 0.0
    %114 = vmatpush.msra.mxu0 0.0
    %115 = vmatpush.msra.mxu0 0.0
    %116 = vmatpush.msra.mxu0 0.0
    %117 = vmatpush.msra.mxu0 0.0
    %118 = vmatpush.msra.mxu0 0.0
    %119 = vmatpush.msra.mxu0 0.0
    %120 = vmatpush.msra.mxu0 0.0
    %121 = vmatpush.msra.mxu0 %v102
    %122 = vmatpush.msra.mxu0 %v101
    %123 = vmatpush.msra.mxu0 %v100
    %124 = vmatpush.msra.mxu0 %v99
    %125 = vmatmul.f32.gmra.mxu0 %v107
    %v126 = vpop.f32.mrf.mxu0
    %v127 = vadd.f32 0.0, %v126
    %128 = vdwg.mxu0
    %v129 = vadd.f32 %v104, %v127
    %v130 = vxor.u32 %v129, 2147483648
    %v131 = vmul.f32 %v130, 1.442695
    %v132 = vpow.pop %v131
    %v133 = vadd.f32 %v132, 1.0
    %v134 = vrcp.pop %v133
    %v135 = vmul.f32 %v133, %v134
    %v136 = vsub.f32 1.0, %v135
    %v137 = vmul.f32 %v134, %v136
    %v138 = vadd.f32 %v134, %v137
    %vm139 = vweird.f32 %v133
    %vm140 = vweird.f32 %v134
    %vm141 = vmor %vm139, %vm140
    %v142 = vsel %vm141, %v134, %v138
    %v143 = vand.u32 2147483647, %v133
    %vm144 = vcmp.eq.f32.partialorder %v143, 8.507059e+37
    %v145 = vand.u32 %v133, 2147483648
    %v146 = vor.u32 1.1754944e-38, %v145
    %v147 = vsel %vm144, %v146, %v142
    %v148 = vmul.f32 1.0, %v147
    %v150 = vperm.slane %v103, 0
    %151 = vrot.lane.b32.xlu0 %v150, 64
    %v152 = vpop.permute.xlu0 %151
    %v154 = vadd.f32 %v127, %v152
    %156 = vrot.lane.b32.xlu0 %v154, 64
    %v157 = vpop.permute.xlu0 %156
    %v159 = vmul.f32 %v148, %v157
    %161 = vrot.lane.b32.xlu0 %v159, 64
    %v162 = vpop.permute.xlu0 %161
    %v164 = vadd.f32 %v104, %v162
    %v165 = vtanh.pop %v164
    %v166 = vsub.f32 1.0, %v148
    %168 = vrot.lane.b32.xlu0 %v165, 96
    %v169 = vpop.permute.xlu0 %168
    %v171 = vmul.f32 %v166, %v169
    %v172 = vmul.f32 %v148, 0.0
    %v173 = vadd.f32 %v171, %v172
    %175 = vrot.lane.b32.xlu0 %v173, 96
    %v176 = vpop.permute.xlu0 %175
    %vm178 = vcmask 254976
    %179 = vst.msk [vmem:[#allocation3] sm:$0x3] %vm178, %v176
    %v180 = vld [vmem:[#allocation2 + $0x2] sm:$0x3]
    %v181 = vsel %vm105, %v176, 0
    %183 = vmatpush.msra.mxu0 0.0
    %184 = vmatpush.msra.mxu0 0.0
    %185 = vmatpush.msra.mxu0 0.0
    %186 = vmatpush.msra.mxu0 0.0
    %187 = vmatpush.msra.mxu0 0.0
    %188 = vmatpush.msra.mxu0 0.0
    %189 = vmatpush.msra.mxu0 0.0
    %190 = vmatpush.msra.mxu0 0.0
    %191 = vmatpush.msra.mxu0 0.0
    %192 = vmatpush.msra.mxu0 0.0
    %193 = vmatpush.msra.mxu0 0.0
    %194 = vmatpush.msra.mxu0 0.0
    %195 = vmatpush.msra.mxu0 %v102
    %196 = vmatpush.msra.mxu0 %v101
    %197 = vmatpush.msra.mxu0 %v100
    %198 = vmatpush.msra.mxu0 %v99
    %199 = vmatmul.f32.gmra.mxu0 %v181
    %v200 = vpop.f32.mrf.mxu0
    %v201 = vadd.f32 0.0, %v200
    %202 = vdwg.mxu0
    %v203 = vadd.f32 %v180, %v201
    %v204 = vxor.u32 %v203, 2147483648
    %v205 = vmul.f32 %v204, 1.442695
    %v206 = vpow.pop %v205
    %v207 = vadd.f32 %v206, 1.0
    %v208 = vrcp.pop %v207
    %v209 = vmul.f32 %v207, %v208
    %v210 = vsub.f32 1.0, %v209
    %v211 = vmul.f32 %v208, %v210
    %v212 = vadd.f32 %v208, %v211
    %vm213 = vweird.f32 %v207
    %vm214 = vweird.f32 %v208
    %vm215 = vmor %vm213, %vm214
    %v216 = vsel %vm215, %v208, %v212
    %v217 = vand.u32 2147483647, %v207
    %vm218 = vcmp.eq.f32.partialorder %v217, 8.507059e+37
    %v219 = vand.u32 %v207, 2147483648
    %v220 = vor.u32 1.1754944e-38, %v219
    %v221 = vsel %vm218, %v220, %v216
    %v222 = vmul.f32 1.0, %v221
    %v223 = vadd.f32 %v201, %v152
    %225 = vrot.lane.b32.xlu0 %v223, 64
    %v226 = vpop.permute.xlu0 %225
    %v228 = vmul.f32 %v222, %v226
    %230 = vrot.lane.b32.xlu0 %v228, 64
    %v231 = vpop.permute.xlu0 %230
    %v233 = vadd.f32 %v180, %v231
    %v234 = vtanh.pop %v233
    %v235 = vsub.f32 1.0, %v222
    %237 = vrot.lane.b32.xlu0 %v234, 96
    %v238 = vpop.permute.xlu0 %237
    %v240 = vmul.f32 %v235, %v238
    %v241 = vmul.f32 %v222, %v173
    %v242 = vadd.f32 %v240, %v241
    %244 = vrot.lane.b32.xlu0 %v242, 96
    %v245 = vpop.permute.xlu0 %244
    %247 = vst.msk [vmem:[#allocation3 + $0x2] sm:$0x3] %vm178, %v245
    %v248 = vld [vmem:[#allocation2 + $0x4] sm:$0x3]
    %v249 = vsel %vm105, %v245, 0
    %251 = vmatpush.msra.mxu0 0.0
    %252 = vmatpush.msra.mxu0 0.0
    %253 = vmatpush.msra.mxu0 0.0
    %254 = vmatpush.msra.mxu0 0.0
    %255 = vmatpush.msra.mxu0 0.0
    %256 = vmatpush.msra.mxu0 0.0
    %257 = vmatpush.msra.mxu0 0.0
    %258 = vmatpush.msra.mxu0 0.0
    %259 = vmatpush.msra.mxu0 0.0
    %260 = vmatpush.msra.mxu0 0.0
    %261 = vmatpush.msra.mxu0 0.0
    %262 = vmatpush.msra.mxu0 0.0
    %263 = vmatpush.msra.mxu0 %v102
    %264 = vmatpush.msra.mxu0 %v101
    %265 = vmatpush.msra.mxu0 %v100
    %266 = vmatpush.msra.mxu0 %v99
    %267 = vmatmul.f32.gmra.mxu0 %v249
    %v268 = vpop.f32.mrf.mxu0
    %v269 = vadd.f32 0.0, %v268
    %270 = vdwg.mxu0
    %v271 = vadd.f32 %v248, %v269
    %v272 = vxor.u32 %v271, 2147483648
    %v273 = vmul.f32 %v272, 1.442695
    %v274 = vpow.pop %v273
    %v275 = vadd.f32 %v274, 1.0
    %v276 = vrcp.pop %v275
    %v277 = vmul.f32 %v275, %v276
    %v278 = vsub.f32 1.0, %v277
    %v279 = vmul.f32 %v276, %v278
    %v280 = vadd.f32 %v276, %v279
    %vm281 = vweird.f32 %v275
    %vm282 = vweird.f32 %v276
    %vm283 = vmor %vm281, %vm282
    %v284 = vsel %vm283, %v276, %v280
    %v285 = vand.u32 2147483647, %v275
    %vm286 = vcmp.eq.f32.partialorder %v285, 8.507059e+37
    %v287 = vand.u32 %v275, 2147483648
    %v288 = vor.u32 1.1754944e-38, %v287
    %v289 = vsel %vm286, %v288, %v284
    %v290 = vmul.f32 1.0, %v289
    %v291 = vadd.f32 %v269, %v152
    %293 = vrot.lane.b32.xlu0 %v291, 64
    %v294 = vpop.permute.xlu0 %293
    %v296 = vmul.f32 %v290, %v294
    %298 = vrot.lane.b32.xlu0 %v296, 64
    %v299 = vpop.permute.xlu0 %298
    %v301 = vadd.f32 %v248, %v299
    %v302 = vtanh.pop %v301
    %v303 = vsub.f32 1.0, %v290
    %305 = vrot.lane.b32.xlu0 %v302, 96
    %v306 = vpop.permute.xlu0 %305
    %v308 = vmul.f32 %v303, %v306
    %v309 = vmul.f32 %v290, %v242
    %v310 = vadd.f32 %v308, %v309
    %312 = vrot.lane.b32.xlu0 %v310, 96
    %v313 = vpop.permute.xlu0 %312
    %315 = vst.msk [vmem:[#allocation3 + $0x4] sm:$0x3] %vm178, %v313
    %v316 = vld [vmem:[#allocation2 + $0x6] sm:$0x3]
    %v317 = vsel %vm105, %v313, 0
    %319 = vmatpush.msra.mxu0 0.0
    %320 = vmatpush.msra.mxu0 0.0
    %321 = vmatpush.msra.mxu0 0.0
    %322 = vmatpush.msra.mxu0 0.0
    %323 = vmatpush.msra.mxu0 0.0
    %324 = vmatpush.msra.mxu0 0.0
    %325 = vmatpush.msra.mxu0 0.0
    %326 = vmatpush.msra.mxu0 0.0
    %327 = vmatpush.msra.mxu0 0.0
    %328 = vmatpush.msra.mxu0 0.0
    %329 = vmatpush.msra.mxu0 0.0
    %330 = vmatpush.msra.mxu0 0.0
    %331 = vmatpush.msra.mxu0 %v102
    %332 = vmatpush.msra.mxu0 %v101
    %333 = vmatpush.msra.mxu0 %v100
    %334 = vmatpush.msra.mxu0 %v99
    %335 = vmatmul.f32.gmra.mxu0 %v317
    %v336 = vpop.f32.mrf.mxu0
    %v337 = vadd.f32 0.0, %v336
    %338 = vdwg.mxu0
    %v339 = vadd.f32 %v316, %v337
    %v340 = vxor.u32 %v339, 2147483648
    %v341 = vmul.f32 %v340, 1.442695
    %v342 = vpow.pop %v341
    %v343 = vadd.f32 %v342, 1.0
    %v344 = vrcp.pop %v343
    %v345 = vmul.f32 %v343, %v344
    %v346 = vsub.f32 1.0, %v345
    %v347 = vmul.f32 %v344, %v346
    %v348 = vadd.f32 %v344, %v347
    %vm349 = vweird.f32 %v343
    %vm350 = vweird.f32 %v344
    %vm351 = vmor %vm349, %vm350
    %v352 = vsel %vm351, %v344, %v348
    %v353 = vand.u32 2147483647, %v343
    %vm354 = vcmp.eq.f32.partialorder %v353, 8.507059e+37
    %v355 = vand.u32 %v343, 2147483648
    %v356 = vor.u32 1.1754944e-38, %v355
    %v357 = vsel %vm354, %v356, %v352
    %v358 = vmul.f32 1.0, %v357
    %v359 = vadd.f32 %v337, %v152
    %361 = vrot.lane.b32.xlu0 %v359, 64
    %v362 = vpop.permute.xlu0 %361
    %v364 = vmul.f32 %v358, %v362
    %366 = vrot.lane.b32.xlu0 %v364, 64
    %v367 = vpop.permute.xlu0 %366
    %v369 = vadd.f32 %v316, %v367
    %v370 = vtanh.pop %v369
    %v371 = vsub.f32 1.0, %v358
    %373 = vrot.lane.b32.xlu0 %v370, 96
    %v374 = vpop.permute.xlu0 %373
    %v376 = vmul.f32 %v371, %v374
    %v377 = vmul.f32 %v358, %v310
    %v378 = vadd.f32 %v376, %v377
    %380 = vrot.lane.b32.xlu0 %v378, 96
    %v381 = vpop.permute.xlu0 %380
    %383 = vst.msk [vmem:[#allocation3 + $0x6] sm:$0x3] %vm178, %v381
    %v384 = vld [vmem:[#allocation2 + $0x8] sm:$0x3]
    %v385 = vsel %vm105, %v381, 0
    %387 = vmatpush.msra.mxu0 0.0
    %388 = vmatpush.msra.mxu0 0.0
    %389 = vmatpush.msra.mxu0 0.0
    %390 = vmatpush.msra.mxu0 0.0
    %391 = vmatpush.msra.mxu0 0.0
    %392 = vmatpush.msra.mxu0 0.0
    %393 = vmatpush.msra.mxu0 0.0
    %394 = vmatpush.msra.mxu0 0.0
    %395 = vmatpush.msra.mxu0 0.0
    %396 = vmatpush.msra.mxu0 0.0
    %397 = vmatpush.msra.mxu0 0.0
    %398 = vmatpush.msra.mxu0 0.0
    %399 = vmatpush.msra.mxu0 %v102
    %400 = vmatpush.msra.mxu0 %v101
    %401 = vmatpush.msra.mxu0 %v100
    %402 = vmatpush.msra.mxu0 %v99
    %403 = vmatmul.f32.gmra.mxu0 %v385
    %v404 = vpop.f32.mrf.mxu0
    %v405 = vadd.f32 0.0, %v404
    %406 = vdwg.mxu0
    %v407 = vadd.f32 %v384, %v405
    %v408 = vxor.u32 %v407, 2147483648
    %v409 = vmul.f32 %v408, 1.442695
    %v410 = vpow.pop %v409
    %v411 = vadd.f32 %v410, 1.0
    %v412 = vrcp.pop %v411
    %v413 = vmul.f32 %v411, %v412
    %v414 = vsub.f32 1.0, %v413
    %v415 = vmul.f32 %v412, %v414
    %v416 = vadd.f32 %v412, %v415
    %vm417 = vweird.f32 %v411
    %vm418 = vweird.f32 %v412
    %vm419 = vmor %vm417, %vm418
    %v420 = vsel %vm419, %v412, %v416
    %v421 = vand.u32 2147483647, %v411
    %vm422 = vcmp.eq.f32.partialorder %v421, 8.507059e+37
    %v423 = vand.u32 %v411, 2147483648
    %v424 = vor.u32 1.1754944e-38, %v423
    %v425 = vsel %vm422, %v424, %v420
    %v426 = vmul.f32 1.0, %v425
    %v427 = vadd.f32 %v405, %v152
    %429 = vrot.lane.b32.xlu0 %v427, 64
    %v430 = vpop.permute.xlu0 %429
    %v432 = vmul.f32 %v426, %v430
    %434 = vrot.lane.b32.xlu0 %v432, 64
    %v435 = vpop.permute.xlu0 %434
    %v437 = vadd.f32 %v384, %v435
    %v438 = vtanh.pop %v437
    %v439 = vsub.f32 1.0, %v426
    %441 = vrot.lane.b32.xlu0 %v438, 96
    %v442 = vpop.permute.xlu0 %441
    %v444 = vmul.f32 %v439, %v442
    %v445 = vmul.f32 %v426, %v378
    %v446 = vadd.f32 %v444, %v445
    %448 = vrot.lane.b32.xlu0 %v446, 96
    %v449 = vpop.permute.xlu0 %448
    %451 = vst.msk [vmem:[#allocation3 + $0x8] sm:$0x3] %vm178, %v449
    %v452 = vld [vmem:[#allocation2 + $0xa] sm:$0x3]
    %v453 = vsel %vm105, %v449, 0
    %455 = vmatpush.msra.mxu0 0.0
    %456 = vmatpush.msra.mxu0 0.0
    %457 = vmatpush.msra.mxu0 0.0
    %458 = vmatpush.msra.mxu0 0.0
    %459 = vmatpush.msra.mxu0 0.0
    %460 = vmatpush.msra.mxu0 0.0
    %461 = vmatpush.msra.mxu0 0.0
    %462 = vmatpush.msra.mxu0 0.0
    %463 = vmatpush.msra.mxu0 0.0
    %464 = vmatpush.msra.mxu0 0.0
    %465 = vmatpush.msra.mxu0 0.0
    %466 = vmatpush.msra.mxu0 0.0
    %467 = vmatpush.msra.mxu0 %v102
    %468 = vmatpush.msra.mxu0 %v101
    %469 = vmatpush.msra.mxu0 %v100
    %470 = vmatpush.msra.mxu0 %v99
    %471 = vmatmul.f32.gmra.mxu0 %v453
    %v472 = vpop.f32.mrf.mxu0
    %v473 = vadd.f32 0.0, %v472
    %474 = vdwg.mxu0
    %v475 = vadd.f32 %v452, %v473
    %v476 = vxor.u32 %v475, 2147483648
    %v477 = vmul.f32 %v476, 1.442695
    %v478 = vpow.pop %v477
    %v479 = vadd.f32 %v478, 1.0
    %v480 = vrcp.pop %v479
    %v481 = vmul.f32 %v479, %v480
    %v482 = vsub.f32 1.0, %v481
    %v483 = vmul.f32 %v480, %v482
    %v484 = vadd.f32 %v480, %v483
    %vm485 = vweird.f32 %v479
    %vm486 = vweird.f32 %v480
    %vm487 = vmor %vm485, %vm486
    %v488 = vsel %vm487, %v480, %v484
    %v489 = vand.u32 2147483647, %v479
    %vm490 = vcmp.eq.f32.partialorder %v489, 8.507059e+37
    %v491 = vand.u32 %v479, 2147483648
    %v492 = vor.u32 1.1754944e-38, %v491
    %v493 = vsel %vm490, %v492, %v488
    %v494 = vmul.f32 1.0, %v493
    %v495 = vadd.f32 %v473, %v152
    %497 = vrot.lane.b32.xlu0 %v495, 64
    %v498 = vpop.permute.xlu0 %497
    %v500 = vmul.f32 %v494, %v498
    %502 = vrot.lane.b32.xlu0 %v500, 64
    %v503 = vpop.permute.xlu0 %502
    %v505 = vadd.f32 %v452, %v503
    %v506 = vtanh.pop %v505
    %v507 = vsub.f32 1.0, %v494
    %509 = vrot.lane.b32.xlu0 %v506, 96
    %v510 = vpop.permute.xlu0 %509
    %v512 = vmul.f32 %v507, %v510
    %v513 = vmul.f32 %v494, %v446
    %v514 = vadd.f32 %v512, %v513
    %516 = vrot.lane.b32.xlu0 %v514, 96
    %v517 = vpop.permute.xlu0 %516
    %519 = vst.msk [vmem:[#allocation3 + $0xa] sm:$0x3] %vm178, %v517
    %v520 = vld [vmem:[#allocation2 + $0xc] sm:$0x3]
    %v521 = vsel %vm105, %v517, 0
    %523 = vmatpush.msra.mxu0 0.0
    %524 = vmatpush.msra.mxu0 0.0
    %525 = vmatpush.msra.mxu0 0.0
    %526 = vmatpush.msra.mxu0 0.0
    %527 = vmatpush.msra.mxu0 0.0
    %528 = vmatpush.msra.mxu0 0.0
    %529 = vmatpush.msra.mxu0 0.0
    %530 = vmatpush.msra.mxu0 0.0
    %531 = vmatpush.msra.mxu0 0.0
    %532 = vmatpush.msra.mxu0 0.0
    %533 = vmatpush.msra.mxu0 0.0
    %534 = vmatpush.msra.mxu0 0.0
    %535 = vmatpush.msra.mxu0 %v102
    %536 = vmatpush.msra.mxu0 %v101
    %537 = vmatpush.msra.mxu0 %v100
    %538 = vmatpush.msra.mxu0 %v99
    %539 = vmatmul.f32.gmra.mxu0 %v521
    %v540 = vpop.f32.mrf.mxu0
    %v541 = vadd.f32 0.0, %v540
    %542 = vdwg.mxu0
    %v543 = vadd.f32 %v520, %v541
    %v544 = vxor.u32 %v543, 2147483648
    %v545 = vmul.f32 %v544, 1.442695
    %v546 = vpow.pop %v545
    %v547 = vadd.f32 %v546, 1.0
    %v548 = vrcp.pop %v547
    %v549 = vmul.f32 %v547, %v548
    %v550 = vsub.f32 1.0, %v549
    %v551 = vmul.f32 %v548, %v550
    %v552 = vadd.f32 %v548, %v551
    %vm553 = vweird.f32 %v547
    %vm554 = vweird.f32 %v548
    %vm555 = vmor %vm553, %vm554
    %v556 = vsel %vm555, %v548, %v552
    %v557 = vand.u32 2147483647, %v547
    %vm558 = vcmp.eq.f32.partialorder %v557, 8.507059e+37
    %v559 = vand.u32 %v547, 2147483648
    %v560 = vor.u32 1.1754944e-38, %v559
    %v561 = vsel %vm558, %v560, %v556
    %v562 = vmul.f32 1.0, %v561
    %v563 = vadd.f32 %v541, %v152
    %565 = vrot.lane.b32.xlu0 %v563, 64
    %v566 = vpop.permute.xlu0 %565
    %v568 = vmul.f32 %v562, %v566
    %570 = vrot.lane.b32.xlu0 %v568, 64
    %v571 = vpop.permute.xlu0 %570
    %v573 = vadd.f32 %v520, %v571
    %v574 = vtanh.pop %v573
    %v575 = vsub.f32 1.0, %v562
    %577 = vrot.lane.b32.xlu0 %v574, 96
    %v578 = vpop.permute.xlu0 %577
    %v580 = vmul.f32 %v575, %v578
    %v581 = vmul.f32 %v562, %v514
    %v582 = vadd.f32 %v580, %v581
    %584 = vrot.lane.b32.xlu0 %v582, 96
    %v585 = vpop.permute.xlu0 %584
    %587 = vst.msk [vmem:[#allocation3 + $0xc] sm:$0x3] %vm178, %v585
    %v588 = vld [vmem:[#allocation2 + $0xe] sm:$0x3]
    %v589 = vsel %vm105, %v585, 0
    %591 = vmatpush.msra.mxu0 0.0
    %592 = vmatpush.msra.mxu0 0.0
    %593 = vmatpush.msra.mxu0 0.0
    %594 = vmatpush.msra.mxu0 0.0
    %595 = vmatpush.msra.mxu0 0.0
    %596 = vmatpush.msra.mxu0 0.0
    %597 = vmatpush.msra.mxu0 0.0
    %598 = vmatpush.msra.mxu0 0.0
    %599 = vmatpush.msra.mxu0 0.0
    %600 = vmatpush.msra.mxu0 0.0
    %601 = vmatpush.msra.mxu0 0.0
    %602 = vmatpush.msra.mxu0 0.0
    %603 = vmatpush.msra.mxu0 %v102
    %604 = vmatpush.msra.mxu0 %v101
    %605 = vmatpush.msra.mxu0 %v100
    %606 = vmatpush.msra.mxu0 %v99
    %607 = vmatmul.f32.gmra.mxu0 %v589
    %v608 = vpop.f32.mrf.mxu0
    %v609 = vadd.f32 0.0, %v608
    %610 = vdwg.mxu0
    %v611 = vadd.f32 %v588, %v609
    %v612 = vxor.u32 %v611, 2147483648
    %v613 = vmul.f32 %v612, 1.442695
    %v614 = vpow.pop %v613
    %v615 = vadd.f32 %v614, 1.0
    %v616 = vrcp.pop %v615
    %v617 = vmul.f32 %v615, %v616
    %v618 = vsub.f32 1.0, %v617
    %v619 = vmul.f32 %v616, %v618
    %v620 = vadd.f32 %v616, %v619
    %vm621 = vweird.f32 %v615
    %vm622 = vweird.f32 %v616
    %vm623 = vmor %vm621, %vm622
    %v624 = vsel %vm623, %v616, %v620
    %v625 = vand.u32 2147483647, %v615
    %vm626 = vcmp.eq.f32.partialorder %v625, 8.507059e+37
    %v627 = vand.u32 %v615, 2147483648
    %v628 = vor.u32 1.1754944e-38, %v627
    %v629 = vsel %vm626, %v628, %v624
    %v630 = vmul.f32 1.0, %v629
    %v631 = vadd.f32 %v609, %v152
    %633 = vrot.lane.b32.xlu0 %v631, 64
    %v634 = vpop.permute.xlu0 %633
    %v636 = vmul.f32 %v630, %v634
    %638 = vrot.lane.b32.xlu0 %v636, 64
    %v639 = vpop.permute.xlu0 %638
    %v641 = vadd.f32 %v588, %v639
    %v642 = vtanh.pop %v641
    %v643 = vsub.f32 1.0, %v630
    %645 = vrot.lane.b32.xlu0 %v642, 96
    %v646 = vpop.permute.xlu0 %645
    %v648 = vmul.f32 %v643, %v646
    %v649 = vmul.f32 %v630, %v582
    %v650 = vadd.f32 %v648, %v649
    %652 = vrot.lane.b32.xlu0 %v650, 96
    %v653 = vpop.permute.xlu0 %652
    %655 = vst.msk [vmem:[#allocation3 + $0xe] sm:$0x3] %vm178, %v653
    %v656 = vld [vmem:[#allocation3] sm:$0xff]
    %v657 = vld [vmem:[#allocation3 + $0x8] sm:$0xff]
    %v658 = vld [vmem:[%s5] sm:$0xff]
    %v659 = vld [vmem:[%s5 + $0x8] sm:$0xff]
    %v660 = vld [vmem:[%s5 + $0x10] sm:$0xff]
    %v661 = vld [vmem:[%s5 + $0x18] sm:$0xff]
    %v662 = vld [vmem:[%s6] sm:$0x1]
    %v664 = vperm.slane %v662, 0
    %v667 = vsel %vm105, %v656, 0
    %v670 = vsel %vm105, %v657, 0
    %672 = vmatpush.msra.mxu0 0.0
    %673 = vmatpush.msra.mxu0 0.0
    %674 = vmatpush.msra.mxu0 0.0
    %675 = vmatpush.msra.mxu0 0.0
    %676 = vmatpush.msra.mxu0 0.0
    %677 = vmatpush.msra.mxu0 0.0
    %678 = vmatpush.msra.mxu0 0.0
    %679 = vmatpush.msra.mxu0 0.0
    %680 = vmatpush.msra.mxu0 0.0
    %681 = vmatpush.msra.mxu0 0.0
    %682 = vmatpush.msra.mxu0 0.0
    %683 = vmatpush.msra.mxu0 0.0
    %684 = vmatpush.msra.mxu0 %v661
    %685 = vmatpush.msra.mxu0 %v660
    %686 = vmatpush.msra.mxu0 %v659
    %687 = vmatpush.msra.mxu0 %v658
    %688 = vmatmul.f32.gmra.mxu0 %v667
    %v689 = vpop.f32.mrf.mxu0
    %v690 = vadd.f32 %v664, %v689
    %691 = vmatmul.f32.gmra.mxu0 %v670
    %v692 = vpop.f32.mrf.mxu0
    %v693 = vadd.f32 %v664, %v692
    %694 = vdwg.mxu0
    %vm695 = vcmask 64512
    %696 = vst.msk [vmem:[%s7] sm:$0xff] %vm695, %v690
    %697 = vst.msk [vmem:[%s7 + $0x8] sm:$0xff] %vm695, %v693
    // Predicated region
    $region38: #{tpu_custom_call.1} parent=1 // pred_check
      _
    $region39: #{tpu_custom_call.1} parent=1 // pred_check_branch
      %699 = sbr.rel (0) target = $region41
    $region40: #{tpu_custom_call.1} parent=1 // pred_region
      _
    $region41: #{tpu_custom_call.1} parent=1 // pred_fallthru
      _
    // Predicated region
    $region42: #{tpu_custom_call.1} parent=1 // pred_check
      _
    $region43: #{tpu_custom_call.1} parent=1 // pred_check_branch
      %701 = sbr.rel (0) target = $region45
    $region44: #{tpu_custom_call.1} parent=1 // pred_region
      _
    $region45: #{tpu_custom_call.1} parent=1 // pred_fallthru
      _
    %702 = vsyncpa [#allocation5], 1
    %703 = vsyncpa [#allocation7], 1

</llo_original>
